<compile_context>
chip_gen: v6e
topology: v6e:2x2x1
jax: 0.10.0
libtpu: 0.0.40
codegen_flags: <defaults>
</compile_context>

<pallas_src>
import jax
import jax.numpy as jnp
from jax.experimental import pallas as pl
from jax.experimental.pallas import tpu as pltpu


def _swish_kernel(x_ref, o_ref):
    xf = x_ref[...].astype(jnp.float32)     # f32 math: matches torch.sigmoid semantics
    # sigmoid(x) = 0.5 * tanh(0.5 * x) + 0.5  -> exactly one EUP transcendental.
    sig = 0.5 * jnp.tanh(0.5 * xf) + 0.5
    o_ref[...] = (xf * sig).astype(o_ref.dtype)


def _default_block_bytes():
    """~4 MiB blocks on v6e/v7x, ~2 MiB on v5e / older (16 MiB scoped VMEM)."""
    try:
        kind = jax.devices()[0].device_kind.lower()
    except Exception:
        return 2 * 1024 * 1024
    if ("v6" in kind) or ("v7" in kind) or ("7x" in kind):
        return 4 * 1024 * 1024
    return 2 * 1024 * 1024


def _choose_tiling(n, itemsize, target_block_bytes):
    """Pick (lane, rows, tile_rows) for a lane-dense 2D slab of n elements.

    n must be a multiple of 128. Guarantees block_shape legality
    (tile_rows % 8 == 0 or tile_rows == rows) and >= 2 grid steps (even when
    cheaply possible) for slabs >= 2 MiB so both v7x TensorCores get work.
    """
    lane = 128
    for cand in (2048, 1024, 512, 256, 128):
        if n % cand == 0:
            lane = cand
            break
    rows = n // lane
    tile_rows = max(1, target_block_bytes // (lane * itemsize))

    # Large slab: make sure the 1-D "parallel" grid has at least 2 steps.
    if n * itemsize >= 2 * 1024 * 1024 and rows >= 16:
        tile_rows = min(tile_rows, pl.cdiv(rows, 2))

    if tile_rows >= rows:
        return lane, rows, rows              # single full-extent block

    # (8,128) constraint: sublane tile a multiple of 8 (32 covers bf16/int8
    # sublane packing) unless it equals the full extent.
    mult = 32 if tile_rows >= 32 else 8
    tile_rows = max(mult, (tile_rows // mult) * mult)
    tile_rows = min(tile_rows, rows)
    if tile_rows == rows:
        return lane, rows, rows

    # Prefer an even number of grid steps (balances the two v7x TCs).
    steps = pl.cdiv(rows, tile_rows)
    if steps > 1 and steps % 2 == 1:
        alt = -(-rows // (steps + 1))                    # ceil
        alt = ((alt + mult - 1) // mult) * mult          # round up, stays <= tile_rows
        if 0 < alt < rows and pl.cdiv(rows, alt) % 2 == 0:
            tile_rows = alt
    return lane, rows, tile_rows


def _swish_2d(x2d, tile_rows, lane):
    rows = x2d.shape[0]
    n = rows * lane
    itemsize = jnp.dtype(x2d.dtype).itemsize
    return pl.pallas_call(
        _swish_kernel,
        out_shape=jax.ShapeDtypeStruct((rows, lane), x2d.dtype),
        grid=(pl.cdiv(rows, tile_rows),),
        in_specs=[pl.BlockSpec((tile_rows, lane), lambda i: (i, 0))],
        out_specs=pl.BlockSpec((tile_rows, lane), lambda i: (i, 0)),
        compiler_params=pltpu.CompilerParams(
            dimension_semantics=("parallel",),
            vmem_limit_bytes=40 * 1024 * 1024,   # headroom over 4 MiB-block pipeline, < v7x 64 MiB physical
        ),
        cost_estimate=pl.CostEstimate(
            flops=4 * n,
            transcendentals=n,
            bytes_accessed=2 * n * itemsize,
        ),
    )(x2d)


def _swish_tail_jnp(x):
    """Plain-XLA swish for the <128-element unaligned tail."""
    xf = x.astype(jnp.float32)
    return (xf * (0.5 * jnp.tanh(0.5 * xf) + 0.5)).astype(x.dtype)


def swish(x):
    """Elementwise x * sigmoid(x) via a Pallas TPU kernel. Any shape/dtype."""
    orig_shape = x.shape
    n = x.size
    if n == 0:
        return x
    itemsize = jnp.dtype(x.dtype).itemsize
    block_bytes = _default_block_bytes()
    x_flat = jnp.ravel(x)                        # contiguous -> free

    if n % 128 == 0:
        # Common aligned case (e.g. NCHW conv activations): no pad, no slice.
        lane, rows, tile_rows = _choose_tiling(n, itemsize, block_bytes)
        out2d = _swish_2d(x_flat.reshape(rows, lane), tile_rows, lane)
        return out2d.reshape(orig_shape)

    aligned = (n // 128) * 128
    if aligned == 0:
        # Tiny (<128 elements): pad a single 128-lane row (negligible copy).
        xp = jnp.pad(x_flat, (0, 128 - n))
        out = _swish_2d(xp.reshape(1, 128), 1, 128)
        return out.reshape(-1)[:n].reshape(orig_shape)

    # General unaligned case: Pallas on the 128-aligned prefix, jnp on the
    # <128-element tail. Avoids a full pad + full slice HBM round trip.
    lane, rows, tile_rows = _choose_tiling(aligned, itemsize, block_bytes)
    head = _swish_2d(x_flat[:aligned].reshape(rows, lane), tile_rows, lane).reshape(-1)
    tail = _swish_tail_jnp(x_flat[aligned:])
    return jnp.concatenate([head, tail]).reshape(orig_shape)


if __name__ == "__main__":
    key = jax.random.PRNGKey(0)

    def ref_swish(x):
        xf = x.astype(jnp.float32)
        return (xf * jax.nn.sigmoid(xf)).astype(x.dtype)

    # 1) Primary NCHW-shaped input (module spec), f32.
    x = jax.random.normal(key, (2, 4, 16, 16), dtype=jnp.float32)
    y = swish(x)
    jax.block_until_ready(y)
    assert y.shape == x.shape and y.dtype == x.dtype
    assert jnp.max(jnp.abs(y - ref_swish(x))) < 1e-5

    # 2) Larger aligned input: exercises the multi-step (parallel) grid path.
    k2 = jax.random.fold_in(key, 1)
    x2 = jax.random.normal(k2, (16, 16, 64, 64), dtype=jnp.float32)
    y2 = swish(x2)
    jax.block_until_ready(y2)
    assert jnp.max(jnp.abs(y2 - ref_swish(x2))) < 1e-5

    # 3) Tiny non-lane-aligned shape (<128 elems): single padded row path.
    k3 = jax.random.fold_in(key, 2)
    x3 = jax.random.normal(k3, (3, 5, 7), dtype=jnp.float32)
    y3 = swish(x3)
    jax.block_until_ready(y3)
    assert y3.shape == x3.shape
    assert jnp.max(jnp.abs(y3 - ref_swish(x3))) < 1e-5

    # 4) Non-lane-aligned with >128 elems: Pallas prefix + jnp tail path.
    k4 = jax.random.fold_in(key, 3)
    x4 = jax.random.normal(k4, (9, 50), dtype=jnp.float32)
    y4 = swish(x4)
    jax.block_until_ready(y4)
    assert y4.shape == x4.shape
    assert jnp.max(jnp.abs(y4 - ref_swish(x4))) < 1e-5

    # 5) bf16 I/O (halves HBM traffic); compute stays f32 inside the kernel.
    x5 = x.astype(jnp.bfloat16)
    y5 = swish(x5)
    jax.block_until_ready(y5)
    assert y5.dtype == jnp.bfloat16
    diff = jnp.max(jnp.abs(y5.astype(jnp.float32) - ref_swish(x5).astype(jnp.float32)))
    assert diff < 1e-2

    print("KERNEL_OK")
</pallas_src>

<mosaic_0001>
module attributes {stable_mosaic.version = 11 : i64} {
  func.func @_swish_kernel(%arg0: i32, %arg1: memref<1x2048xf32, #tpu.memory_space<vmem>>, %arg2: memref<1x2048xf32, #tpu.memory_space<vmem>>) attributes {dimension_semantics = [#tpu.dimension_semantics<parallel>], iteration_bounds = array<i64: 1>, scalar_prefetch = 0 : i64, scratch_operands = 0 : i64, tpu.core_type = #tpu.core_type<tc>, window_params = [{transform_indices = @transform_0, window_bounds = array<i64: 1, 2048>}, {transform_indices = @transform_1, window_bounds = array<i64: 1, 2048>}]} {
    %c0 = arith.constant 0 : index
    %c0_0 = arith.constant 0 : index
    %0 = vector.load %arg1[%c0, %c0_0] : memref<1x2048xf32, #tpu.memory_space<vmem>>, vector<1x2048xf32>
    %cst = arith.constant 5.000000e-01 : f32
    %1 = vector.broadcast %cst : f32 to vector<1x2048xf32>
    %2 = arith.mulf %1, %0 : vector<1x2048xf32>
    %3 = math.tanh %2 : vector<1x2048xf32>
    %cst_1 = arith.constant 5.000000e-01 : f32
    %4 = vector.broadcast %cst_1 : f32 to vector<1x2048xf32>
    %5 = arith.mulf %4, %3 : vector<1x2048xf32>
    %cst_2 = arith.constant 5.000000e-01 : f32
    %6 = vector.broadcast %cst_2 : f32 to vector<1x2048xf32>
    %7 = arith.addf %5, %6 : vector<1x2048xf32>
    %8 = arith.mulf %0, %7 : vector<1x2048xf32>
    %c0_3 = arith.constant 0 : index
    %c0_4 = arith.constant 0 : index
    %9 = vector.load %arg2[%c0_3, %c0_4] : memref<1x2048xf32, #tpu.memory_space<vmem>>, vector<1x2048xf32>
    tpu.vector_store %arg2[%c0_3, %c0_4], %8 {strides = array<i32>} : memref<1x2048xf32, #tpu.memory_space<vmem>>, vector<1x2048xf32>,
    return
  }
  func.func @transform_0(%arg0: i32) -> (i32, i32) {
    %c0_i32 = arith.constant 0 : i32
    %c0_i32_0 = arith.constant 0 : i32
    return %arg0, %c0_i32 : i32, i32
  }
  func.func @transform_1(%arg0: i32) -> (i32, i32) {
    %c0_i32 = arith.constant 0 : i32
    %c0_i32_0 = arith.constant 0 : i32
    return %arg0, %c0_i32 : i32, i32
  }
}

</mosaic_0001>

<llo_original>
// kernel: tpu_custom_call.1
$region0: #{tpu_custom_call.1}
  #allocation0 [shape = 'u32[]', space=smem, size = 0x4, offset = 0x4, fixed_abs, tag = 'smem constant byte address 0x4 - core index']
  #allocation1 [shape = 'u32[144,128]{1,0:T(1,128)}', space=vmem, size = 0x12000, scoped, tag = 'internal scratch']
  %s0 = inlined_call_operand.hbm [shape: f32[1,2048], index: 0, kind: input, shape index: {}]
  %s1 = inlined_call_operand.hbm [shape: f32[1,2048], index: 1, kind: output, shape index: {}]
  %s2 = sld [smem:[#allocation0]]
  $region18: #{tpu_custom_call.1} parent=0
    _
  %s4 = ssub.s32 1, %s2
  %s5 = scalar_select 0, %s4, %s2
  $region1: #{tpu_custom_call.1} parent=0
    #allocation2 [shape = 'u8[8192]{0}', space=vmem, size = 0x2000, scoped, tag = 'input window, operand 0, single buffered']
    #allocation3 [shape = 's32[1]{0}', space=sflag, size = 0x4, scoped, tag = 'scoped memory for tpu_custom_call.1']
    #allocation4 [shape = 's32[1]{0}', space=sflag, size = 0x4, scoped, tag = 'scoped memory for tpu_custom_call.1']
    #allocation5 [shape = 'u8[8192]{0}', space=vmem, size = 0x2000, scoped, tag = 'output window, operand 0, single buffered']
    %6 = vsyncpa [#allocation3], 0
    %7 = vsyncpa [#allocation4], 0
    // Predicated region
    $region2: #{tpu_custom_call.1} parent=1 // pred_check
      _
    $region3: #{tpu_custom_call.1} parent=1 // pred_check_branch
      %9 = sbr.rel (0) target = $region5
    $region4: #{tpu_custom_call.1} parent=1 // pred_region
      %s11 = ssub.s32 256, 256
      %12 = vsyncadd [#allocation3], %s11
      %s14 = sshll.u32 [#allocation2], 4
      %s15 = int_to_ptr.vmem [resolvable:$true] %s14
      %17 = dma.hbm_to_vmem [thread:$0]  %s0, 256, %s15, [#allocation3]
    $region5: #{tpu_custom_call.1} parent=1 // pred_fallthru
      _
    // Predicated region
    $region6: #{tpu_custom_call.1} parent=1 // pred_check
      _
    $region7: #{tpu_custom_call.1} parent=1 // pred_check_branch
      %19 = sbr.rel (0) target = $region9
    $region8: #{tpu_custom_call.1} parent=1 // pred_region
      %20 = dma.done [#allocation3], 256
    $region9: #{tpu_custom_call.1} parent=1 // pred_fallthru
      _
    %v21 = vld [vmem:[#allocation2] sm:$0xff]
    %v22 = vld [vmem:[#allocation2 + $0x8] sm:$0xff]
    %v23 = vmul.f32 %v21, 0.5
    %v24 = vmul.f32 %v22, 0.5
    %v25 = vtanh.pop %v23
    %v26 = vtanh.pop %v24
    %v27 = vmul.f32 %v25, 0.5
    %v28 = vmul.f32 %v26, 0.5
    %v29 = vadd.f32 %v27, 0.5
    %v30 = vadd.f32 %v28, 0.5
    %v31 = vmul.f32 %v21, %v29
    %v32 = vmul.f32 %v22, %v30
    %33 = vst [vmem:[#allocation5] sm:$0xff] %v31
    %34 = vst [vmem:[#allocation5 + $0x8] sm:$0xff] %v32
    // Predicated region
    $region10: #{tpu_custom_call.1} parent=1 // pred_check
      _
    $region11: #{tpu_custom_call.1} parent=1 // pred_check_branch
      %36 = sbr.rel (0) target = $region13
    $region12: #{tpu_custom_call.1} parent=1 // pred_region
      %s38 = ssub.s32 256, 256
      %39 = vsyncadd [#allocation4], %s38
      %s41 = sshll.u32 [#allocation5], 4
      %s42 = int_to_ptr.vmem [resolvable:$true] %s41
      %44 = dma.vmem_to_hbm [thread:$0]  %s42, 256, %s1, [#allocation4]
    $region13: #{tpu_custom_call.1} parent=1 // pred_fallthru
      _
    // Predicated region
    $region14: #{tpu_custom_call.1} parent=1 // pred_check
      _
    $region15: #{tpu_custom_call.1} parent=1 // pred_check_branch
      %46 = sbr.rel (0) target = $region17
    $region16: #{tpu_custom_call.1} parent=1 // pred_region
      %47 = dma.done [#allocation4], 256
    $region17: #{tpu_custom_call.1} parent=1 // pred_fallthru
      _
    %48 = vsyncpa [#allocation3], 1
    %49 = vsyncpa [#allocation4], 1

</llo_original>
